<compile_context>
chip_gen: v7x
topology: tpu7x:2x2x1
jax: 0.10.0
libtpu: 0.0.40
codegen_flags: <defaults>
</compile_context>

<pallas_src>
import jax
import jax.numpy as jnp
from jax.experimental import pallas as pl
from jax.experimental.pallas import tpu as pltpu


def _patch_embed_kernel(patches_ref, w_ref, cls_ref, out_ref):
    # patches_ref: (bt*NP, K_pad)    w_ref: (K_pad, wn)
    # cls_ref    : (1, wn)           out_ref: (bt, 1+NP, wn)
    bt = out_ref.shape[0]
    npatches = out_ref.shape[1] - 1
    wn = out_ref.shape[2]

    # One big lane-dense, full-depth MXU matmul, f32 accumulation.
    acc = jnp.dot(patches_ref[...], w_ref[...],
                  preferred_element_type=jnp.float32)        # (bt*NP, wn)

    # Class-embedding row for every image in the block (row 0).
    cls_blk = jnp.broadcast_to(cls_ref[...], (bt, wn)).astype(out_ref.dtype)
    out_ref[:, 0, :] = cls_blk

    # Patch rows: direct per-image stores (no concatenate / full-block copy).
    for b in range(bt):                      # bt is small and static
        out_ref[b, 1:, :] = acc[b * npatches:(b + 1) * npatches, :].astype(
            out_ref.dtype)


def _pick_bt(B, npatches, max_rows=512):
    """Largest divisor of B whose M-tile (bt*NP) is <= max_rows and 8-aligned."""
    for cand in range(B, 0, -1):
        if B % cand:
            continue
        rows = cand * npatches
        if rows <= max_rows and (rows % 8 == 0 or cand == B):
            return cand
    return B


def _pick_wn(width, max_wn=512):
    if width <= max_wn:
        return width
    for cand in (512, 384, 256, 128):
        if width % cand == 0:
            return cand
    return width


def conv_backbone_forward(x, conv_weight, class_embedding, *, patch_size,
                          bt=None, wn=None, compute_dtype=None):
    """x: (B, 3, H, W) NCHW. Returns (B, 1 + num_patches, width) in x.dtype."""
    B, C, H, W = x.shape
    P = patch_size
    assert H % P == 0 and W % P == 0
    Hp, Wp = H // P, W // P
    NP = Hp * Wp
    width = conv_weight.shape[0]
    K = C * P * P
    K_pad = ((K + 127) // 128) * 128
    cdt = jnp.dtype(compute_dtype) if compute_dtype is not None else x.dtype

    if bt is None:
        bt = _pick_bt(B, NP)
    assert B % bt == 0 and ((bt * NP) % 8 == 0 or bt == B)
    if wn is None:
        wn = _pick_wn(width)
    assert width % wn == 0 and (wn % 128 == 0 or wn == width)

    # im2col: the reshape below is a free view; the transpose+cast+(zero-)pad is
    # a single XLA fusion writing the lane-dense, K-padded patch matrix once.
    patches = x.reshape(B, C, Hp, P, Wp, P).transpose(0, 2, 4, 1, 3, 5)
    patches = patches.reshape(B * NP, K).astype(cdt)
    if K_pad != K:
        patches = jnp.pad(patches, ((0, 0), (0, K_pad - K)))

    # conv weight (width, C, P, P) -> (K_pad, width); zero rows are inert.
    w_mat = conv_weight.reshape(width, K).T.astype(cdt)
    if K_pad != K:
        w_mat = jnp.pad(w_mat, ((0, K_pad - K), (0, 0)))

    cls = class_embedding.reshape(1, width).astype(jnp.float32)

    out_shape = jax.ShapeDtypeStruct((B, 1 + NP, width), x.dtype)

    esz = jnp.dtype(cdt).itemsize
    osz = jnp.dtype(x.dtype).itemsize
    block_bytes = (bt * NP * K_pad * esz          # patch block
                   + K_pad * wn * esz             # weight block
                   + wn * 4                       # class row
                   + bt * (1 + NP) * wn * osz)    # output block
    vmem_limit = int(min(64 * 2**20, max(32 * 2**20, 4 * block_bytes)))

    grid = (B // bt, width // wn)
    cost = pl.CostEstimate(
        flops=2 * B * NP * K_pad * width,
        transcendentals=0,
        bytes_accessed=int(patches.size * esz + w_mat.size * esz
                           + cls.size * 4 + B * (1 + NP) * width * osz))

    return pl.pallas_call(
        _patch_embed_kernel,
        out_shape=out_shape,
        grid=grid,
        in_specs=[
            pl.BlockSpec((bt * NP, K_pad), lambda i, j: (i, 0)),
            pl.BlockSpec((K_pad, wn), lambda i, j: (0, j)),
            pl.BlockSpec((1, wn), lambda i, j: (0, j)),
        ],
        out_specs=pl.BlockSpec((bt, 1 + NP, wn), lambda i, j: (i, 0, j)),
        compiler_params=pltpu.CompilerParams(
            dimension_semantics=("parallel", "parallel"),
            vmem_limit_bytes=vmem_limit),
        cost_estimate=cost,
    )(patches, w_mat, cls)


def conv_backbone_reference(x, conv_weight, class_embedding, *, patch_size):
    """Pure-JAX reference reproducing the PyTorch forward."""
    y = jax.lax.conv_general_dilated(
        x, conv_weight,
        window_strides=(patch_size, patch_size),
        padding="VALID",
        dimension_numbers=("NCHW", "OIHW", "NCHW"))
    B, Cw, Hp, Wp = y.shape
    y = y.reshape(B, Cw, Hp * Wp).transpose(0, 2, 1)        # (B, num_patches, width)
    cls = jnp.broadcast_to(class_embedding.astype(x.dtype), (B, 1, Cw))
    return jnp.concatenate([cls, y], axis=1)


if __name__ == "__main__":
    # Small, module-consistent shapes (in_channels fixed at 3 by the module).
    B, C, H, W = 4, 3, 16, 16
    patch_size = 4
    width = 256

    key = jax.random.PRNGKey(0)
    kx, kw, kc = jax.random.split(key, 3)

    x = jax.random.normal(kx, (B, C, H, W), dtype=jnp.float32)

    # Deterministic parameter init (shapes from nn.Conv2d / nn.Parameter).
    fan_in = C * patch_size * patch_size
    bound = 1.0 / (fan_in ** 0.5)
    conv_weight = jax.random.uniform(
        kw, (width, C, patch_size, patch_size),
        minval=-bound, maxval=bound, dtype=jnp.float32)
    scale = width ** (-0.5)
    class_embedding = scale * jax.random.normal(kc, (width,), dtype=jnp.float32)

    ref = conv_backbone_reference(x, conv_weight, class_embedding,
                                  patch_size=patch_size)

    # f32 path: bt=2 / wn=128 -> grid (2, 2), exercising both parallel axes and
    # patch-block residency across the inner width axis.
    out = conv_backbone_forward(x, conv_weight, class_embedding,
                                patch_size=patch_size, bt=2, wn=128)
    out = jax.block_until_ready(out)
    assert out.shape == (B, 1 + (H // patch_size) * (W // patch_size), width)
    assert out.dtype == x.dtype
    assert jnp.allclose(out, ref, atol=2e-4, rtol=2e-4)

    # bf16-input fast path (v6e/v7x), f32 accumulation kept -> looser tolerance.
    out_bf16 = conv_backbone_forward(x, conv_weight, class_embedding,
                                     patch_size=patch_size,
                                     compute_dtype=jnp.bfloat16)
    out_bf16 = jax.block_until_ready(out_bf16)
    assert out_bf16.shape == out.shape
    assert jnp.allclose(out_bf16, ref, atol=5e-2, rtol=5e-2)

    print("KERNEL_OK")
</pallas_src>

<mosaic_0001>
module attributes {stable_mosaic.version = 11 : i64} {
  func.func @_patch_embed_kernel(%arg0: i32, %arg1: i32, %arg2: memref<32x128xf32, #tpu.memory_space<vmem>>, %arg3: memref<128x128xf32, #tpu.memory_space<vmem>>, %arg4: memref<1x128xf32, #tpu.memory_space<vmem>>, %arg5: memref<2x17x128xf32, #tpu.memory_space<vmem>>) attributes {dimension_semantics = [#tpu.dimension_semantics<parallel>, #tpu.dimension_semantics<parallel>], iteration_bounds = array<i64: 2, 2>, scalar_prefetch = 0 : i64, scratch_operands = 0 : i64, tpu.core_type = #tpu.core_type<tc>, window_params = [{transform_indices = @transform_0, window_bounds = array<i64: 32, 128>}, {transform_indices = @transform_1, window_bounds = array<i64: 128, 128>}, {transform_indices = @transform_2, window_bounds = array<i64: 1, 128>}, {transform_indices = @transform_3, window_bounds = array<i64: 2, 17, 128>}]} {
    %c0 = arith.constant 0 : index
    %c0_0 = arith.constant 0 : index
    %0 = vector.load %arg2[%c0, %c0_0] : memref<32x128xf32, #tpu.memory_space<vmem>>, vector<32x128xf32>
    %c0_1 = arith.constant 0 : index
    %c0_2 = arith.constant 0 : index
    %1 = vector.load %arg3[%c0_1, %c0_2] : memref<128x128xf32, #tpu.memory_space<vmem>>, vector<128x128xf32>
    %cst = arith.constant dense<0.000000e+00> : vector<32x128xf32>
    %2 = tpu.matmul %0, %1, %cst {dimension_numbers = #tpu.dot_dimension_numbers<[1], [0], [0], [1], [0, 0, 1, 1], [], []>} : vector<32x128xf32>, vector<128x128xf32>, vector<32x128xf32> -> vector<32x128xf32>
    %c0_3 = arith.constant 0 : index
    %c0_4 = arith.constant 0 : index
    %3 = vector.load %arg4[%c0_3, %c0_4] : memref<1x128xf32, #tpu.memory_space<vmem>>, vector<1x128xf32>
    %4 = vector.shape_cast %3 : vector<1x128xf32> to vector<1x128xf32>
    %5 = vector.broadcast %4 : vector<1x128xf32> to vector<2x128xf32>
    %c0_5 = arith.constant 0 : index
    %c0_6 = arith.constant 0 : index
    %c0_7 = arith.constant 0 : index
    %6 = vector.load %arg5[%c0_5, %c0_6, %c0_7] : memref<2x17x128xf32, #tpu.memory_space<vmem>>, vector<2x1x128xf32>
    %7 = vector.shape_cast %6 : vector<2x1x128xf32> to vector<2x128xf32>
    %8 = vector.shape_cast %5 : vector<2x128xf32> to vector<2x1x128xf32>
    tpu.vector_store %arg5[%c0_5, %c0_6, %c0_7], %8 {strides = array<i32>} : memref<2x17x128xf32, #tpu.memory_space<vmem>>, vector<2x1x128xf32>,
    %9 = vector.extract_strided_slice %2 {offsets = [0, 0], sizes = [16, 128], strides = [1, 1]} : vector<32x128xf32> to vector<16x128xf32>
    %c0_8 = arith.constant 0 : index
    %c1 = arith.constant 1 : index
    %c0_9 = arith.constant 0 : index
    %10 = vector.load %arg5[%c0_8, %c1, %c0_9] : memref<2x17x128xf32, #tpu.memory_space<vmem>>, vector<1x16x128xf32>
    %11 = vector.shape_cast %10 : vector<1x16x128xf32> to vector<16x128xf32>
    %12 = vector.shape_cast %9 : vector<16x128xf32> to vector<1x16x128xf32>
    tpu.vector_store %arg5[%c0_8, %c1, %c0_9], %12 {strides = array<i32>} : memref<2x17x128xf32, #tpu.memory_space<vmem>>, vector<1x16x128xf32>,
    %13 = vector.extract_strided_slice %2 {offsets = [16, 0], sizes = [16, 128], strides = [1, 1]} : vector<32x128xf32> to vector<16x128xf32>
    %c1_10 = arith.constant 1 : index
    %c1_11 = arith.constant 1 : index
    %c0_12 = arith.constant 0 : index
    %14 = vector.load %arg5[%c1_10, %c1_11, %c0_12] : memref<2x17x128xf32, #tpu.memory_space<vmem>>, vector<1x16x128xf32>
    %15 = vector.shape_cast %14 : vector<1x16x128xf32> to vector<16x128xf32>
    %16 = vector.shape_cast %13 : vector<16x128xf32> to vector<1x16x128xf32>
    tpu.vector_store %arg5[%c1_10, %c1_11, %c0_12], %16 {strides = array<i32>} : memref<2x17x128xf32, #tpu.memory_space<vmem>>, vector<1x16x128xf32>,
    return
  }
  func.func @transform_0(%arg0: i32, %arg1: i32) -> (i32, i32) {
    %c0_i32 = arith.constant 0 : i32
    %c0_i32_0 = arith.constant 0 : i32
    return %arg0, %c0_i32 : i32, i32
  }
  func.func @transform_1(%arg0: i32, %arg1: i32) -> (i32, i32) {
    %c0_i32 = arith.constant 0 : i32
    %c0_i32_0 = arith.constant 0 : i32
    return %c0_i32, %arg1 : i32, i32
  }
  func.func @transform_2(%arg0: i32, %arg1: i32) -> (i32, i32) {
    %c0_i32 = arith.constant 0 : i32
    %c0_i32_0 = arith.constant 0 : i32
    return %c0_i32, %arg1 : i32, i32
  }
  func.func @transform_3(%arg0: i32, %arg1: i32) -> (i32, i32, i32) {
    %c0_i32 = arith.constant 0 : i32
    %c0_i32_0 = arith.constant 0 : i32
    return %arg0, %c0_i32, %arg1 : i32, i32, i32
  }
}

</mosaic_0001>

<llo_original>
// kernel: tpu_custom_call.1
$region0: #{tpu_custom_call.1}
  #allocation0 [shape = 'u32[]', space=smem, size = 0x4, offset = 0x4, fixed_abs, tag = 'smem constant byte address 0x4 - core index']
  #allocation1 [shape = 'u32[144,128]{1,0:T(1,128)}', space=vmem, size = 0x12000, scoped, tag = 'internal scratch']
  %s0 = inlined_call_operand.hbm [shape: f32[64,128], index: 0, kind: input, shape index: {}]
  %s1 = inlined_call_operand.hbm [shape: f32[128,256], index: 1, kind: input, shape index: {}]
  %s2 = inlined_call_operand.vmem [shape: f32[1,256], index: 2, kind: input, shape index: {}]
  %s3 = inlined_call_operand.vmem [shape: f32[4,17,256], index: 3, kind: output, shape index: {}]
  %s4 = sld [smem:[#allocation0]]
  $region87: #{tpu_custom_call.1} parent=0
    _
  %s6 = ssub.s32 1, %s4
  %s7 = scalar_select 0, %s6, %s4
  $region1: #{tpu_custom_call.1} parent=0
    #allocation2 [shape = 'u8[32768]{0}', space=vmem, size = 0x8000, scoped, tag = 'input window, operand 0']
    #allocation3 [shape = 's32[2]{0}', space=sflag, size = 0x8, scoped, tag = 'scoped memory for tpu_custom_call.1']
    #allocation4 [shape = 'u8[131072]{0}', space=vmem, size = 0x20000, scoped, tag = 'input window, operand 1']
    #allocation5 [shape = 's32[2]{0}', space=sflag, size = 0x8, scoped, tag = 'scoped memory for tpu_custom_call.1']
    #allocation6 [shape = 'u8[49152]{0}', space=vmem, size = 0xc000, scoped, tag = 'output window, operand 0']
    %8 = vsyncpa [#allocation3], 0
    %s9 = scalar_lea.sflag [#allocation3], 1
    %10 = vsyncpa %s9, 0
    %11 = vsyncpa [#allocation5], 0
    %s12 = scalar_lea.sflag [#allocation5], 1
    %13 = vsyncpa %s12, 0
    loop: start=0, step=1, limit=6
    $region2: #{tpu_custom_call.1} parent=1 // loop_pre_header
      _
    $region3: #{tpu_custom_call.1} parent=1 // loop_header
      %s15 = sphi 0, %s19
      %p16 = scmp.ge.s32.totalorder %s15, 6
      %s22 = sphi 0, %s34
      %s23 = sphi 0, %s30
      %s24 = sphi 0, %s22
      %s25 = sphi 0, %s23
      %s26 = sphi 0, %s24
      %s27 = sphi 0, %s25
      %s37 = sphi 0, %s39
      %s40 = sphi 0, %s37
      %s41 = sphi 0, %s40
      %s57 = sphi 0, %s41
      %s63 = sphi 0, %s65
      %s66 = sphi 0, %s63
      %s67 = sphi 0, %s66
      %s83 = sphi 0, %s67
      %s89 = sphi 0, %s91
      %s92 = sphi 0, %s89
      %s93 = sphi 0, %s92
      %s109 = sphi 0, %s93
      %s117 = sphi 0, %s119
      %s120 = sphi 0, %s117
      %s121 = sphi 0, %s120
      %s137 = sphi 0, %s121
    $region4: #{tpu_custom_call.1} parent=1 // loop_header_branch
      %18 = sbr.rel (%p16) target = $region8
    $region5: #{tpu_custom_call.1} parent=1 // loop_body
      %s20 = ssub.s32 %s15, 1
      %s21 = ssub.s32 %s15, 2
      %s28 = sadd.s32 1, %s23
      %p29 = scmp.ge.s32.totalorder %s28, 2
      %s30 = scalar_select %p29, 0, %s28
      %s31 = sadd.s32 1, %s22
      %s32 = scalar_select %p29, %s31, %s22
      %p33 = scmp.ge.s32.totalorder %s32, 2
      %s34 = scalar_select %p33, 0, %s32
      %s35 = ssub.s32 %s22, %s34
      %p36 = scmp.eq.s32.totalorder %s35, 0
      %s38 = sadd.s32 %s37, 1
      %s39 = scalar_select %p36, %s37, %s38
      %p42 = pneg %p36
      %p43 = scmp.eq.s32.totalorder %s15, 3
      %p44 = por %p42, %p43
      %p45 = scmp.ne.s32.totalorder %s37, %s40
      %p46 = scmp.eq.s32.totalorder %s15, 0
      %p47 = por %p45, %p46
      %p48 = scmp.ne.s32.totalorder %s37, %s40
      %p49 = scmp.eq.s32.totalorder %s20, 3
      %p50 = por %p48, %p49
      %p51 = scmp.ne.s32.totalorder %s40, %s41
      %p52 = scmp.eq.s32.totalorder %s20, 0
      %p53 = por %p51, %p52
      %p54 = scmp.ne.s32.totalorder %s40, %s41
      %p55 = scmp.eq.s32.totalorder %s21, 3
      %p56 = por %p54, %p55
      %p58 = scmp.ne.s32.totalorder %s41, %s57
      %p59 = scmp.eq.s32.totalorder %s21, 0
      %p60 = por %p58, %p59
      %s61 = ssub.s32 %s23, %s30
      %p62 = scmp.eq.s32.totalorder %s61, 0
      %s64 = sadd.s32 %s63, 1
      %s65 = scalar_select %p62, %s63, %s64
      %p68 = pneg %p62
      %p69 = scmp.eq.s32.totalorder %s15, 3
      %p70 = por %p68, %p69
      %p71 = scmp.ne.s32.totalorder %s63, %s66
      %p72 = scmp.eq.s32.totalorder %s15, 0
      %p73 = por %p71, %p72
      %p74 = scmp.ne.s32.totalorder %s63, %s66
      %p75 = scmp.eq.s32.totalorder %s20, 3
      %p76 = por %p74, %p75
      %p77 = scmp.ne.s32.totalorder %s66, %s67
      %p78 = scmp.eq.s32.totalorder %s20, 0
      %p79 = por %p77, %p78
      %p80 = scmp.ne.s32.totalorder %s66, %s67
      %p81 = scmp.eq.s32.totalorder %s21, 3
      %p82 = por %p80, %p81
      %p84 = scmp.ne.s32.totalorder %s67, %s83
      %p85 = scmp.eq.s32.totalorder %s21, 0
      %p86 = por %p84, %p85
      %s87 = ssub.s32 %s23, %s30
      %p88 = scmp.eq.s32.totalorder %s87, 0
      %s90 = sadd.s32 %s89, 1
      %s91 = scalar_select %p88, %s89, %s90
      %p94 = pneg %p88
      %p95 = scmp.eq.s32.totalorder %s15, 3
      %p96 = por %p94, %p95
      %p97 = scmp.ne.s32.totalorder %s89, %s92
      %p98 = scmp.eq.s32.totalorder %s15, 0
      %p99 = por %p97, %p98
      %p100 = scmp.ne.s32.totalorder %s89, %s92
      %p101 = scmp.eq.s32.totalorder %s20, 3
      %p102 = por %p100, %p101
      %p103 = scmp.ne.s32.totalorder %s92, %s93
      %p104 = scmp.eq.s32.totalorder %s20, 0
      %p105 = por %p103, %p104
      %p106 = scmp.ne.s32.totalorder %s92, %s93
      %p107 = scmp.eq.s32.totalorder %s21, 3
      %p108 = por %p106, %p107
      %p110 = scmp.ne.s32.totalorder %s93, %s109
      %p111 = scmp.eq.s32.totalorder %s21, 0
      %p112 = por %p110, %p111
      %s113 = ssub.s32 %s22, %s34
      %s114 = ssub.s32 %s23, %s30
      %s115 = sor.u32 %s113, %s114
      %p116 = scmp.eq.s32.totalorder %s115, 0
      %s118 = sadd.s32 %s117, 1
      %s119 = scalar_select %p116, %s117, %s118
      %p122 = pneg %p116
      %p123 = scmp.eq.s32.totalorder %s15, 3
      %p124 = por %p122, %p123
      %p125 = scmp.ne.s32.totalorder %s117, %s120
      %p126 = scmp.eq.s32.totalorder %s15, 0
      %p127 = por %p125, %p126
      %p128 = scmp.ne.s32.totalorder %s117, %s120
      %p129 = scmp.eq.s32.totalorder %s20, 3
      %p130 = por %p128, %p129
      %p131 = scmp.ne.s32.totalorder %s120, %s121
      %p132 = scmp.eq.s32.totalorder %s20, 0
      %p133 = por %p131, %p132
      %p134 = scmp.ne.s32.totalorder %s120, %s121
      %p135 = scmp.eq.s32.totalorder %s21, 3
      %p136 = por %p134, %p135
      %p138 = scmp.ne.s32.totalorder %s121, %s137
      %p139 = scmp.eq.s32.totalorder %s21, 0
      %p140 = por %p138, %p139
      %p141 = scmp.le.s32.totalorder 1, %s15
      %p142 = scmp.lt.s32.totalorder %s15, 5
      %p143 = pnand %p141, %p142
      %p144 = pneg %p143
      // Predicated region
      $region9: #{tpu_custom_call.1} parent=5 // pred_check
        _
      $region10: #{tpu_custom_call.1} parent=5 // pred_check_branch
        %146 = sbr.rel (%p143) target = $region12
      $region11: #{tpu_custom_call.1} parent=5 // pred_region
        %s147 = ssub.s32 %s15, 1
      $region12: #{tpu_custom_call.1} parent=5 // pred_fallthru
        _
      %p148 = scmp.lt.s32.totalorder %s15, 4
      // Predicated region
      $region13: #{tpu_custom_call.1} parent=5 // pred_check
        %p149 = pneg %p148
      $region14: #{tpu_custom_call.1} parent=5 // pred_check_branch
        %151 = sbr.rel (%p149) target = $region16
      $region15: #{tpu_custom_call.1} parent=5 // pred_region
        // Predicated region
        $region17: #{tpu_custom_call.1} parent=15 // pred_check
          %p152 = pneg %p47
        $region18: #{tpu_custom_call.1} parent=15 // pred_check_branch
          %154 = sbr.rel (%p152) target = $region20
        $region19: #{tpu_custom_call.1} parent=15 // pred_region
          %s155 = sand.u32 %s37, 1
          %s156 = scalar_lea.sflag [#allocation3], %s155
          %s157 = sand.u32 %s37, 1
          %s158 = smul.addr %s157, 32
          %s159 = scalar_lea.vmem [#allocation2], %s158
          %s160 = smul.u32 4, %s22
          %s162 = ssub.s32 512, 512
          %163 = vsyncadd %s156, %s162
          %s164 = smul.addr %s160, 128
          %s165 = scalar_lea.hbm %s0, %s164
          %s166 = sshll.u32 %s159, 4
          %s167 = int_to_ptr.vmem [resolvable:$true] %s166
          %172 = dma.hbm_to_vmem [thread:$0]  %s165, 512, %s167, %s156, 128, 128, 8
        $region20: #{tpu_custom_call.1} parent=15 // pred_fallthru
          _
        // Predicated region
        $region21: #{tpu_custom_call.1} parent=15 // pred_check
          %p173 = pneg %p73
        $region22: #{tpu_custom_call.1} parent=15 // pred_check_branch
          %175 = sbr.rel (%p173) target = $region24
        $region23: #{tpu_custom_call.1} parent=15 // pred_region
          %s176 = sand.u32 %s63, 1
          %s177 = scalar_lea.sflag [#allocation5], %s176
          %s178 = sand.u32 %s63, 1
          %s179 = smul.addr %s178, 128
          %s180 = scalar_lea.vmem [#allocation4], %s179
          %s182 = ssub.s32 2048, 2048
          %183 = vsyncadd %s177, %s182
          %s184 = smul.addr %s23, 128
          %s185 = scalar_lea.hbm %s1, %s184
          %s186 = sshll.u32 %s180, 4
          %s187 = int_to_ptr.vmem [resolvable:$true] %s186
          %192 = dma.hbm_to_vmem [thread:$0]  %s185, 2048, %s187, %s177, 256, 128, 8
        $region24: #{tpu_custom_call.1} parent=15 // pred_fallthru
          _
        // Predicated region
        $region25: #{tpu_custom_call.1} parent=15 // pred_check
          %p193 = pneg %p99
        $region26: #{tpu_custom_call.1} parent=15 // pred_check_branch
          %195 = sbr.rel (%p193) target = $region28
        $region27: #{tpu_custom_call.1} parent=15 // pred_region
          %p196 = scmp.lt.s32.totalorder %s23, 1
          %s197 = scalar_select %p196, %s23, 1
          %s198 = scalar_lea.vmem %s2, %s197
        $region28: #{tpu_custom_call.1} parent=15 // pred_fallthru
          _
      $region16: #{tpu_custom_call.1} parent=5 // pred_fallthru
        _
      %p199 = scmp.le.s32.totalorder 1, %s15
      %p200 = scmp.lt.s32.totalorder %s15, 5
      %p201 = pnand %p199, %p200
      %p202 = pneg %p201
      // Predicated region
      $region29: #{tpu_custom_call.1} parent=5 // pred_check
        _
      $region30: #{tpu_custom_call.1} parent=5 // pred_check_branch
        %204 = sbr.rel (%p201) target = $region32
      $region31: #{tpu_custom_call.1} parent=5 // pred_region
        %s205 = ssub.s32 %s15, 1
        %s206 = sand.u32 %s40, 1
        %s207 = scalar_lea.sflag [#allocation3], %s206
        %s208 = sand.u32 %s40, 1
        %s209 = smul.addr %s208, 32
        %s210 = scalar_lea.vmem [#allocation2], %s209
        // Predicated region
        $region33: #{tpu_custom_call.1} parent=31 // pred_check
          %p211 = pneg %p53
        $region34: #{tpu_custom_call.1} parent=31 // pred_check_branch
          %213 = sbr.rel (%p211) target = $region36
        $region35: #{tpu_custom_call.1} parent=31 // pred_region
          %214 = dma.done %s207, 512
        $region36: #{tpu_custom_call.1} parent=31 // pred_fallthru
          _
        %s215 = sand.u32 %s66, 1
        %s216 = scalar_lea.sflag [#allocation5], %s215
        %s217 = sand.u32 %s66, 1
        %s218 = smul.addr %s217, 128
        %s219 = scalar_lea.vmem [#allocation4], %s218
        // Predicated region
        $region37: #{tpu_custom_call.1} parent=31 // pred_check
          %p220 = pneg %p79
        $region38: #{tpu_custom_call.1} parent=31 // pred_check_branch
          %222 = sbr.rel (%p220) target = $region40
        $region39: #{tpu_custom_call.1} parent=31 // pred_region
          %223 = dma.done %s216, 2048
        $region40: #{tpu_custom_call.1} parent=31 // pred_fallthru
          _
        %s224 = sand.u32 %s40, 1
        %s225 = scalar_lea.sflag [#allocation3], %s224
        %s226 = sand.u32 %s40, 1
        %s227 = smul.addr %s226, 32
        %s228 = scalar_lea.vmem [#allocation2], %s227
        %p229 = pneg %p53
        %p230 = pneg %p50
        %s231 = sand.u32 %s66, 1
        %s232 = scalar_lea.sflag [#allocation5], %s231
        %s233 = sand.u32 %s66, 1
        %s234 = smul.addr %s233, 128
        %s235 = scalar_lea.vmem [#allocation4], %s234
        %p236 = pneg %p79
        %p237 = pneg %p76
        %p238 = scmp.lt.s32.totalorder %s25, 1
        %s239 = scalar_select %p238, %s25, 1
        %s240 = scalar_lea.vmem %s2, %s239
        %p241 = pneg %p105
        %p242 = pneg %p102
        %p243 = pneg %p133
        %p244 = pneg %p130
        %s245 = sand.u32 %s120, 1
        %s246 = sand.u32 %s120, 1
        %s247 = smul.addr %s246, 48
        %s248 = scalar_lea.vmem [#allocation6], %s247
        %s249 = smul.u32 4, %s24
        %p250 = scmp.lt.s32.totalorder %s25, 1
        %s251 = scalar_select %p250, %s25, 1
        %s252 = scalar_lea.vmem %s2, %s251
        %s253 = smul.u32 2, %s24
        %v254 = vld [vmem:[%s210] sm:$0xff]
        %v255 = vld [vmem:[%s210 + $0x8] sm:$0xff]
        %v256 = vld [vmem:[%s210 + $0x10] sm:$0xff]
        %v257 = vld [vmem:[%s210 + $0x18] sm:$0xff]
        %v258 = vld [vmem:[%s219] sm:$0xff]
        %v259 = vld [vmem:[%s219 + $0x8] sm:$0xff]
        %v260 = vld [vmem:[%s219 + $0x10] sm:$0xff]
        %v261 = vld [vmem:[%s219 + $0x18] sm:$0xff]
        %v262 = vld [vmem:[%s219 + $0x20] sm:$0xff]
        %v263 = vld [vmem:[%s219 + $0x28] sm:$0xff]
        %v264 = vld [vmem:[%s219 + $0x30] sm:$0xff]
        %v265 = vld [vmem:[%s219 + $0x38] sm:$0xff]
        %v266 = vld [vmem:[%s219 + $0x40] sm:$0xff]
        %v267 = vld [vmem:[%s219 + $0x48] sm:$0xff]
        %v268 = vld [vmem:[%s219 + $0x50] sm:$0xff]
        %v269 = vld [vmem:[%s219 + $0x58] sm:$0xff]
        %v270 = vld [vmem:[%s219 + $0x60] sm:$0xff]
        %v271 = vld [vmem:[%s219 + $0x68] sm:$0xff]
        %v272 = vld [vmem:[%s219 + $0x70] sm:$0xff]
        %v273 = vld [vmem:[%s219 + $0x78] sm:$0xff]
        %274 = vmatprep.subr.mxu0 0.0
        %275 = vmatpush1.msra.mxu0 %v258
        %276 = vmatprep.subr.mxu0 0.0
        %277 = vmatpush1.msra.mxu0 %v259
        %278 = vmatprep.subr.mxu0 0.0
        %279 = vmatpush1.msra.mxu0 %v260
        %280 = vmatprep.subr.mxu0 0.0
        %281 = vmatpush1.msra.mxu0 %v261
        %282 = vmatprep.subr.mxu0 0.0
        %283 = vmatpush1.msra.mxu0 %v262
        %284 = vmatprep.subr.mxu0 0.0
        %285 = vmatpush1.msra.mxu0 %v263
        %286 = vmatprep.subr.mxu0 0.0
        %287 = vmatpush1.msra.mxu0 %v264
        %288 = vmatprep.subr.mxu0 0.0
        %289 = vmatpush1.msra.mxu0 %v265
        %290 = vmatprep.subr.mxu0 0.0
        %291 = vmatpush1.msra.mxu0 %v266
        %292 = vmatprep.subr.mxu0 0.0
        %293 = vmatpush1.msra.mxu0 %v267
        %294 = vmatprep.subr.mxu0 0.0
        %295 = vmatpush1.msra.mxu0 %v268
        %296 = vmatprep.subr.mxu0 0.0
        %297 = vmatpush1.msra.mxu0 %v269
        %298 = vmatprep.subr.mxu0 0.0
        %299 = vmatpush1.msra.mxu0 %v270
        %300 = vmatprep.subr.mxu0 0.0
        %301 = vmatpush1.msra.mxu0 %v271
        %302 = vmatprep.subr.mxu0 0.0
        %303 = vmatpush1.msra.mxu0 %v272
        %304 = vmatprep.subr.mxu0 0.0
        %305 = vmatpush1.msra.mxu0 %v273
        %306 = vmatprep.subr.mxu0 0.0
        %307 = vmatpush1.msra.mxu0 0.0
        %308 = vmatprep.subr.mxu0 0.0
        %309 = vmatpush1.msra.mxu0 0.0
        %310 = vmatprep.subr.mxu0 0.0
        %311 = vmatpush1.msra.mxu0 0.0
        %312 = vmatprep.subr.mxu0 0.0
        %313 = vmatpush1.msra.mxu0 0.0
        %314 = vmatprep.subr.mxu0 0.0
        %315 = vmatpush1.msra.mxu0 0.0
        %316 = vmatprep.subr.mxu0 0.0
        %317 = vmatpush1.msra.mxu0 0.0
        %318 = vmatprep.subr.mxu0 0.0
        %319 = vmatpush1.msra.mxu0 0.0
        %320 = vmatprep.subr.mxu0 0.0
        %321 = vmatpush1.msra.mxu0 0.0
        %322 = vmatprep.subr.mxu0 0.0
        %323 = vmatpush1.msra.mxu0 0.0
        %324 = vmatprep.subr.mxu0 0.0
        %325 = vmatpush1.msra.mxu0 0.0
        %326 = vmatprep.subr.mxu0 0.0
        %327 = vmatpush1.msra.mxu0 0.0
        %328 = vmatprep.subr.mxu0 0.0
        %329 = vmatpush1.msra.mxu0 0.0
        %330 = vmatprep.subr.mxu0 0.0
        %331 = vmatpush1.msra.mxu0 0.0
        %332 = vmatprep.subr.mxu0 0.0
        %333 = vmatpush1.msra.mxu0 0.0
        %334 = vmatprep.subr.mxu0 0.0
        %335 = vmatpush1.msra.mxu0 0.0
        %336 = vmatprep.subr.mxu0 0.0
        %337 = vmatpush1.msra.mxu0 0.0
        %338 = vmatprep.mubr.f32.mxu0 0.0
        %339 = vmatmul.mubr.f32.gmra.mrb[0].mxu0 %v254
        %v340 = vpop.f32.mrb[0].mxu0
        %v341 = vadd.f32 0.0, %v340
        %v342 = vpop.f32.mrb[0].mxu0
        %343 = vmatprep.mubr.f32.mxu0 0.0
        %344 = vmatmul.mubr.f32.gmra.mrb[0].mxu0 %v255
        %v345 = vpop.f32.mrb[0].mxu0
        %v346 = vadd.f32 0.0, %v345
        %v347 = vpop.f32.mrb[0].mxu0
        %348 = vmatprep.mubr.f32.mxu0 0.0
        %349 = vmatmul.mubr.f32.gmra.mrb[0].mxu0 %v256
        %v350 = vpop.f32.mrb[0].mxu0
        %v351 = vadd.f32 0.0, %v350
        %v352 = vpop.f32.mrb[0].mxu0
        %353 = vmatprep.mubr.f32.mxu0 0.0
        %354 = vmatmul.mubr.f32.gmra.mrb[0].mxu0 %v257
        %v355 = vpop.f32.mrb[0].mxu0
        %v356 = vadd.f32 0.0, %v355
        %v357 = vpop.f32.mrb[0].mxu0
        %358 = vdwg.mxu0
        %v359 = vld [vmem:[%s252] sm:$0x1]
        %v361 = vlaneseq
        %v362 = vshrl.u32 %v361, 7
        %v363 = vsub.s32 0, %v362
        %v364 = vrot.slane %v359, %v363
        %v366 = vunpack.c.l.s4 1966171168
        %v367 = vunpack.c.0.s8 %v366
        %v368 = vlaneseq
        %v369 = vshrl.u32 %v368, 7
        %v370 = vsub.s32 %v367, %v369
        %v371 = vrot.slane %v364, %v370
        %v372 = vcombine.high %v371, %v371
        %v374 = vunpack.c.l.s4 1966171168
        %v375 = vunpack.c.0.s8 %v374
        %v376 = vlaneseq
        %v377 = vshrl.u32 %v376, 7
        %v378 = vsub.s32 %v375, %v377
        %v379 = vrot.slane %v371, %v378
        %v381 = vunpack.c.l.s4 1966171168
        %v382 = vunpack.c.0.s8 %v381
        %v383 = vlaneseq
        %v384 = vshrl.u32 %v383, 7
        %v385 = vsub.s32 %v382, %v384
        %v386 = vrot.slane %v372, %v385
        %389 = vst [vmem:[%s248] sm:$0x1] %v379
        %390 = vst [vmem:[%s248 + $0x18] sm:$0x1] %v386
        %391 = vst [vmem:[%s248 + $0x1] sm:$0xff] %v341
        %392 = vst [vmem:[%s248 + $0x9] sm:$0xff] %v346
        %s393 = scalar_lea.vmem %s248, 24 [#allocation6]
        %394 = vst [vmem:[%s393 + $0x1] sm:$0xff] %v351
        %395 = vst [vmem:[%s393 + $0x9] sm:$0xff] %v356
        %s396 = sand.u32 %s120, 1
        %s397 = sand.u32 %s120, 1
        %s398 = smul.addr %s397, 48
        %s399 = scalar_lea.vmem [#allocation6], %s398
        // Predicated region
        $region41: #{tpu_custom_call.1} parent=31 // pred_check
          %p400 = pneg %p130
        $region42: #{tpu_custom_call.1} parent=31 // pred_check_branch
          %402 = sbr.rel (%p400) target = $region44
        $region43: #{tpu_custom_call.1} parent=31 // pred_region
          %s403 = smul.u32 2, %s24
          %s404 = smul.addr %s403, 6
          %s405 = sadd.s32 %s25, %s404
          %s406 = smul.addr %s405, 8
          %s407 = scalar_lea.vmem %s3, %s406
          // Predicated region
          $region45: #{tpu_custom_call.1} parent=43 // pred_check
            _
          $region46: #{tpu_custom_call.1} parent=43 // pred_check_branch
            %409 = sbr.rel (0) target = $region48
          $region47: #{tpu_custom_call.1} parent=43 // pred_region
            // Predicated region
            $region49: #{tpu_custom_call.1} parent=47 // pred_check
              _
            $region50: #{tpu_custom_call.1} parent=47 // pred_check_branch
              %411 = sbr.rel (0) target = $region52
            $region51: #{tpu_custom_call.1} parent=47 // pred_region
              // Predicated region
              $region64: #{tpu_custom_call.1} parent=51 // pred_check
                _
              $region65: #{tpu_custom_call.1} parent=51 // pred_check_branch
                %436 = sbr.rel (0) target = $region67
              $region66: #{tpu_custom_call.1} parent=51 // pred_region
                loop: start=0, step=1, limit=1
                $region68: #{tpu_custom_call.1} parent=66 // loop_pre_header
                  _
                $region69: #{tpu_custom_call.1} parent=66 // loop_header
                  %s438 = sphi 0, %s442
                  %p439 = scmp.ge.s32.totalorder %s438, 1
                  %s443 = sphi %s399, %s399
                  %s444 = sphi %s407, %s407
                $region70: #{tpu_custom_call.1} parent=66 // loop_header_branch
                  %441 = sbr.rel (%p439) target = $region74
                $region71: #{tpu_custom_call.1} parent=66 // loop_body
                  %v445 = vld [vmem:[%s443] sm:$0xff]
                  %446 = vst [vmem:[%s444] sm:$0xff] %v445
                  %v447 = vld [vmem:[%s443 + $0x8] sm:$0xff]
                  %448 = vst [vmem:[%s444 + $0x10] sm:$0xff] %v447
                  %v449 = vld [vmem:[%s443 + $0x10] sm:$0xff]
                  %450 = vst [vmem:[%s444 + $0x20] sm:$0xff] %v449
                  %v451 = vld [vmem:[%s443 + $0x18] sm:$0xff]
                  %452 = vst [vmem:[%s444 + $0x30] sm:$0xff] %v451
                  %v453 = vld [vmem:[%s443 + $0x20] sm:$0xff]
                  %454 = vst [vmem:[%s444 + $0x40] sm:$0xff] %v453
                  %v455 = vld [vmem:[%s443 + $0x28] sm:$0xff]
                  %456 = vst [vmem:[%s444 + $0x50] sm:$0xff] %v455
                $region72: #{tpu_custom_call.1} parent=66 // loop_footer
                  %s442 = sadd.s32 1, %s438
                $region73: #{tpu_custom_call.1} parent=66 // loop_footer_branch
                  %437 = sbr.rel target = $region69
                $region74: #{tpu_custom_call.1} parent=66 // loop_exit
                  _
              $region67: #{tpu_custom_call.1} parent=51 // pred_fallthru
                _
              // Predicated region
              $region75: #{tpu_custom_call.1} parent=51 // pred_check
                _
              $region76: #{tpu_custom_call.1} parent=51 // pred_check_branch
                %458 = sbr.rel target = $region78
              $region77: #{tpu_custom_call.1} parent=51 // pred_region
                _
              $region78: #{tpu_custom_call.1} parent=51 // pred_fallthru
                _
            $region52: #{tpu_custom_call.1} parent=47 // pred_fallthru
              _
            // Predicated region
            $region53: #{tpu_custom_call.1} parent=47 // pred_check
              _
            $region54: #{tpu_custom_call.1} parent=47 // pred_check_branch
              %413 = sbr.rel target = $region56
            $region55: #{tpu_custom_call.1} parent=47 // pred_region
              loop: start=0, step=1, limit=1
              $region57: #{tpu_custom_call.1} parent=55 // loop_pre_header
                _
              $region58: #{tpu_custom_call.1} parent=55 // loop_header
                %s416 = sphi 0, %s420
                %p417 = scmp.ge.s32.totalorder %s416, 1
                %s421 = sphi %s399, %s399
                %s422 = sphi %s407, %s407
              $region59: #{tpu_custom_call.1} parent=55 // loop_header_branch
                %419 = sbr.rel (%p417) target = $region63
              $region60: #{tpu_custom_call.1} parent=55 // loop_body
                %v423 = vld [vmem:[%s421] sm:$0xff]
                %424 = vst [vmem:[%s422] sm:$0xff] %v423
                %v425 = vld [vmem:[%s421 + $0x8] sm:$0xff]
                %426 = vst [vmem:[%s422 + $0x10] sm:$0xff] %v425
                %v427 = vld [vmem:[%s421 + $0x10] sm:$0xff]
                %428 = vst [vmem:[%s422 + $0x20] sm:$0xff] %v427
                %v429 = vld [vmem:[%s421 + $0x18] sm:$0xff]
                %430 = vst [vmem:[%s422 + $0x30] sm:$0xff] %v429
                %v431 = vld [vmem:[%s421 + $0x20] sm:$0xff]
                %432 = vst [vmem:[%s422 + $0x40] sm:$0xff] %v431
                %v433 = vld [vmem:[%s421 + $0x28] sm:$0xff]
                %434 = vst [vmem:[%s422 + $0x50] sm:$0xff] %v433
              $region61: #{tpu_custom_call.1} parent=55 // loop_footer
                %s420 = sadd.s32 1, %s416
              $region62: #{tpu_custom_call.1} parent=55 // loop_footer_branch
                %415 = sbr.rel target = $region58
              $region63: #{tpu_custom_call.1} parent=55 // loop_exit
                _
            $region56: #{tpu_custom_call.1} parent=47 // pred_fallthru
              _
          $region48: #{tpu_custom_call.1} parent=43 // pred_fallthru
            _
          %459 = vnop
        $region44: #{tpu_custom_call.1} parent=31 // pred_fallthru
          _
      $region32: #{tpu_custom_call.1} parent=5 // pred_fallthru
        _
      %p460 = scmp.le.s32.totalorder 2, %s15
      // Predicated region
      $region79: #{tpu_custom_call.1} parent=5 // pred_check
        %p461 = pneg %p460
      $region80: #{tpu_custom_call.1} parent=5 // pred_check_branch
        %463 = sbr.rel (%p461) target = $region82
      $region81: #{tpu_custom_call.1} parent=5 // pred_region
        %s464 = ssub.s32 %s15, 2
        // Predicated region
        $region83: #{tpu_custom_call.1} parent=81 // pred_check
          %p465 = pneg %p136
        $region84: #{tpu_custom_call.1} parent=81 // pred_check_branch
          %467 = sbr.rel (%p465) target = $region86
        $region85: #{tpu_custom_call.1} parent=81 // pred_region
          %s468 = sand.u32 %s121, 1
          %s469 = sand.u32 %s121, 1
          %s470 = smul.addr %s469, 48
          %s471 = scalar_lea.vmem [#allocation6], %s470
        $region86: #{tpu_custom_call.1} parent=81 // pred_fallthru
          _
      $region82: #{tpu_custom_call.1} parent=5 // pred_fallthru
        _
    $region6: #{tpu_custom_call.1} parent=1 // loop_footer
      %s19 = sadd.s32 1, %s15
    $region7: #{tpu_custom_call.1} parent=1 // loop_footer_branch
      %14 = sbr.rel target = $region3
    $region8: #{tpu_custom_call.1} parent=1 // loop_exit
      _
    %472 = vsyncpa [#allocation3], 1
    %s473 = scalar_lea.sflag [#allocation3], 1
    %474 = vsyncpa %s473, 1
    %475 = vsyncpa [#allocation5], 1
    %s476 = scalar_lea.sflag [#allocation5], 1
    %477 = vsyncpa %s476, 1

</llo_original>
